<compile_context>
chip_gen: v6e
topology: v6e:2x2x1
jax: 0.10.0
libtpu: 0.0.40
codegen_flags: <defaults>
</compile_context>

<pallas_src>
import jax
import jax.numpy as jnp
import numpy as np
from jax.experimental import pallas as pl
from jax.experimental.pallas import tpu as pltpu

# Problem sizes (small, consistent with the module's forward signature).
B = 2        # batch_size
N = 8        # num_nodes
F_IN = 16    # in_channels
E = 8        # edge_channels
MID = 32     # mid_channels
OUT = 16     # out_channels


def mpnn_kernel(x_ref, adjt_ref, adjtb_ref, eat_ref,
                wcat_ref, wep_ref, bmsg_ref, bout_ref,
                o_ref, lhs_ref, rhs_ref):
    """Single invocation, everything VMEM-resident, exactly 2 MXU pushes.

    x_ref    : (B*N, F_IN)        node features, batch flattened in the wrapper
    adjt_ref : (B*N_j, N_i)       adj^T rows: adjt[(b,j), i] = adj[b,i,j]
    adjtb_ref: (B*N, B*N)         block-diagonal adj^T
    eat_ref  : (B*N_j, E, N_i)    edge features, contraction axis (N_i) last
    wcat_ref : (F_IN, 3*OUT)      [W1^T Wo2^T | W2^T Wo2^T | Wo1^T]
    wep_ref  : (E, OUT)           We^T Wo2^T
    bmsg_ref : (1, OUT)           (b1 + b2 + be) @ Wo2^T   (scaled by deg)
    bout_ref : (1, OUT)           bo1 + bo2
    o_ref    : (B*N, OUT)
    lhs_ref  : (B*N, B*N + E)     VMEM scratch, fused-matmul LHS
    rhs_ref  : (B*N + E, OUT)     VMEM scratch, fused-matmul RHS
    """
    bn = x_ref.shape[0]
    out = o_ref.shape[1]

    # MXU push #1: one wide matmul covers x@W1', x@W2' and o1(x).
    y = jnp.dot(x_ref[...], wcat_ref[...], preferred_element_type=jnp.float32)
    msg1 = y[:, :out]            # x @ (W1^T Wo2^T)   (B*N, OUT)
    msg2 = y[:, out:2 * out]     # x @ (W2^T Wo2^T)   (B*N, OUT)
    h1 = y[:, 2 * out:]          # o1(x) (no bias)    (B*N, OUT)

    adjt = adjt_ref[...]                                 # (B*N_j, N_i)
    deg = jnp.sum(adjt, axis=-1, keepdims=True)          # (B*N_j, 1)

    # Adjacency-weighted edge features: adjt broadcast over E is a stride-0
    # sublane broadcast; the reduce over N_i is a lane reduce.
    wea = jnp.sum(adjt[:, None, :] * eat_ref[...], axis=-1)   # (B*N_j, E)

    # MXU push #2: fuse (blockdiag(adj^T) @ msg2) + (wea @ We') into ONE matmul:
    #   [ adj^T_blk | wea ] @ [ msg2 ; We' ]   -- the sum happens in the MXU acc.
    lhs_ref[:, :bn] = adjtb_ref[...]
    lhs_ref[:, bn:] = wea
    rhs_ref[:bn, :] = msg2
    rhs_ref[bn:, :] = wep_ref[...]
    t = jnp.dot(lhs_ref[...], rhs_ref[...], preferred_element_type=jnp.float32)

    o_ref[...] = (h1 + bout_ref[...] + deg * (msg1 + bmsg_ref[...]) + t
                  ).astype(o_ref.dtype)


def init_params(key):
    """Deterministic PyTorch-Linear-style init: U(-1/sqrt(fan_in), 1/sqrt(fan_in))."""
    def linear(key, fan_in, fan_out):
        kw, kb = jax.random.split(key)
        bound = 1.0 / np.sqrt(fan_in)
        w = jax.random.uniform(kw, (fan_out, fan_in), jnp.float32, -bound, bound)
        b = jax.random.uniform(kb, (fan_out,), jnp.float32, -bound, bound)
        return w, b

    keys = jax.random.split(key, 5)
    p = {}
    p["w1"], p["b1"] = linear(keys[0], F_IN, MID)    # m_1
    p["w2"], p["b2"] = linear(keys[1], F_IN, MID)    # m_2
    p["we"], p["be"] = linear(keys[2], E, MID)       # m_e
    p["wo1"], p["bo1"] = linear(keys[3], F_IN, OUT)  # o1
    p["wo2"], p["bo2"] = linear(keys[4], MID, OUT)   # o2
    return p


def pack_params(params):
    """One-time weight/bias packing, called OUTSIDE the per-call jitted path.

    Folds Wo2 into m_1 / m_2 / m_e (exact reassociation: deg is a per-row scalar,
    so deg*(A)@Wo2 == deg*(A@Wo2)) and fuses the three x-projections into one
    (F_IN, 3*OUT) matrix.  The fold matmuls run once at full precision.
    """
    hp = jax.lax.Precision.HIGHEST
    wo2t = params["wo2"].T                                         # (MID, OUT)
    w1p = jnp.matmul(params["w1"].T, wo2t, precision=hp)           # (F_IN, OUT)
    w2p = jnp.matmul(params["w2"].T, wo2t, precision=hp)           # (F_IN, OUT)
    wep = jnp.matmul(params["we"].T, wo2t, precision=hp)           # (E, OUT)
    wcat = jnp.concatenate([w1p, w2p, params["wo1"].T], axis=1)    # (F_IN, 3*OUT)
    bmsg = jnp.matmul(params["b1"] + params["b2"] + params["be"], wo2t,
                      precision=hp).reshape(1, -1)                 # (1, OUT)
    bout = (params["bo1"] + params["bo2"]).reshape(1, -1)          # (1, OUT)
    return {"wcat": wcat, "wep": wep, "bmsg": bmsg, "bout": bout}


@jax.jit
def mpnn_conv_pallas(x, adj, edge_attr, packed):
    b, n, f_in = x.shape
    e = edge_attr.shape[-1]
    out = packed["wep"].shape[1]

    # Per-call input layout plumbing (cheap XLA ops at the HBM boundary; the
    # weight-side plumbing is already hoisted into pack_params).
    x_flat = x.reshape(b * n, f_in)                               # (B*N, F_IN)
    adj_t = jnp.swapaxes(adj, 1, 2)                               # adj_t[b,j,i] = adj[b,i,j]
    adjt_flat = adj_t.reshape(b * n, n)                           # (B*N_j, N_i)
    eye_b = jnp.eye(b, dtype=adj_t.dtype)
    adjt_blk = (eye_b[:, None, :, None] * adj_t[:, :, None, :]).reshape(b * n, b * n)
    ea_t = jnp.transpose(edge_attr, (0, 2, 3, 1)).reshape(b * n, e, n)   # (B*N_j, E, N_i)

    # Whole problem is a few KiB; grid-less, everything VMEM-resident.
    vmem = pl.BlockSpec(memory_space=pltpu.MemorySpace.VMEM)

    out_flat = pl.pallas_call(
        mpnn_kernel,
        out_shape=jax.ShapeDtypeStruct((b * n, out), jnp.float32),
        in_specs=[vmem] * 8,
        out_specs=vmem,
        scratch_shapes=[
            pltpu.VMEM((b * n, b * n + e), jnp.float32),   # fused-matmul LHS
            pltpu.VMEM((b * n + e, out), jnp.float32),     # fused-matmul RHS
        ],
    )(x_flat, adjt_flat, adjt_blk, ea_t,
      packed["wcat"], packed["wep"], packed["bmsg"], packed["bout"])
    return out_flat.reshape(b, n, out)


def mpnn_conv_ref(x, adj, edge_attr, params):
    """Faithful PyTorch-order reference (net/activations None, aggregator='sum')."""
    msg1 = x @ params["w1"].T + params["b1"]                    # (B, N, MID)
    msg2 = x @ params["w2"].T + params["b2"]                    # (B, N, MID)
    msge = edge_attr @ params["we"].T + params["be"]            # (B, N, N, MID)
    msg = msg1[:, None, :, :] + msg2[:, :, None, :] + msge      # (B, N_i, N_j, MID)
    agg = jnp.sum(msg * adj[..., None], axis=1)                 # (B, N_j, MID)
    h1 = x @ params["wo1"].T + params["bo1"]
    h2 = agg @ params["wo2"].T + params["bo2"]
    return h1 + h2


def mpnn_conv_ref_folded(x, adj, edge_attr, packed):
    """Pure-JAX transliteration of the kernel math (same packed tensors).
    Algebraically identical to mpnn_conv_ref for aggregator='sum'."""
    b, n, f_in = x.shape
    e = edge_attr.shape[-1]
    out = packed["wep"].shape[1]

    x_flat = x.reshape(b * n, f_in)
    adj_t = jnp.swapaxes(adj, 1, 2)
    adjt_flat = adj_t.reshape(b * n, n)
    eye_b = jnp.eye(b, dtype=adj_t.dtype)
    adjt_blk = (eye_b[:, None, :, None] * adj_t[:, :, None, :]).reshape(b * n, b * n)
    ea_t = jnp.transpose(edge_attr, (0, 2, 3, 1)).reshape(b * n, e, n)

    y = x_flat @ packed["wcat"]
    msg1, msg2, h1 = y[:, :out], y[:, out:2 * out], y[:, 2 * out:]
    deg = jnp.sum(adjt_flat, axis=-1, keepdims=True)
    wea = jnp.sum(adjt_flat[:, None, :] * ea_t, axis=-1)
    t = adjt_blk @ msg2 + wea @ packed["wep"]
    res = h1 + packed["bout"] + deg * (msg1 + packed["bmsg"]) + t
    return res.reshape(b, n, out)


if __name__ == "__main__":
    key = jax.random.PRNGKey(0)
    k_p, k_x, k_a, k_e = jax.random.split(key, 4)

    params = init_params(k_p)
    packed = pack_params(params)          # one-time packing, outside the jitted per-call path
    packed = jax.tree_util.tree_map(jax.block_until_ready, packed)

    x = jax.random.normal(k_x, (B, N, F_IN), jnp.float32)
    adj = (jax.random.uniform(k_a, (B, N, N)) > 0.5).astype(jnp.float32)
    edge_attr = jax.random.normal(k_e, (B, N, N, E), jnp.float32)

    out = mpnn_conv_pallas(x, adj, edge_attr, packed)
    out = jax.block_until_ready(out)

    ref_fold = mpnn_conv_ref_folded(x, adj, edge_attr, packed)
    ref_mod = mpnn_conv_ref(x, adj, edge_attr, params)

    # Check 1 — same-math reference (the kernel's folded/linearized formula in plain
    # JAX with the SAME packed tensors).  Any indexing / transpose / bias / fold bug
    # would show up as an O(1) error; the tolerance only absorbs MXU accumulation-
    # order / reduced-precision-multiplicand noise on identical intermediates.
    np.testing.assert_allclose(np.asarray(out), np.asarray(ref_fold),
                               rtol=2e-2, atol=2e-2)

    # Check 2 — module-order reference (PyTorch op order, msg tensor materialized).
    # The kernel reassociates the aggregation and folds Wo2 (exact in real
    # arithmetic); combined with the MXU's reduced-precision default path for f32
    # matmuls this yields ~1e-2-scale element differences, hence the looser
    # tolerance.  Structural errors would still be O(1) and caught here.
    np.testing.assert_allclose(np.asarray(out), np.asarray(ref_mod),
                               rtol=1e-1, atol=1e-1)

    print("KERNEL_OK")
</pallas_src>

<mosaic_0001>
module attributes {stable_mosaic.version = 11 : i64} {
  func.func @mpnn_kernel(%arg0: memref<16x16xf32, #tpu.memory_space<vmem>>, %arg1: memref<16x8xf32, #tpu.memory_space<vmem>>, %arg2: memref<16x16xf32, #tpu.memory_space<vmem>>, %arg3: memref<16x8x8xf32, #tpu.memory_space<vmem>>, %arg4: memref<16x48xf32, #tpu.memory_space<vmem>>, %arg5: memref<8x16xf32, #tpu.memory_space<vmem>>, %arg6: memref<1x16xf32, #tpu.memory_space<vmem>>, %arg7: memref<1x16xf32, #tpu.memory_space<vmem>>, %arg8: memref<16x16xf32, #tpu.memory_space<vmem>>, %arg9: memref<16x24xf32, #tpu.memory_space<vmem>>, %arg10: memref<24x16xf32, #tpu.memory_space<vmem>>) attributes {dimension_semantics = [], scalar_prefetch = 0 : i64, scratch_operands = 2 : i64, tpu.core_type = #tpu.core_type<tc>} {
    %c0 = arith.constant 0 : index
    %c0_0 = arith.constant 0 : index
    %0 = vector.load %arg0[%c0, %c0_0] : memref<16x16xf32, #tpu.memory_space<vmem>>, vector<16x16xf32>
    %c0_1 = arith.constant 0 : index
    %c0_2 = arith.constant 0 : index
    %1 = vector.load %arg4[%c0_1, %c0_2] : memref<16x48xf32, #tpu.memory_space<vmem>>, vector<16x48xf32>
    %cst = arith.constant dense<0.000000e+00> : vector<16x48xf32>
    %2 = tpu.matmul %0, %1, %cst {dimension_numbers = #tpu.dot_dimension_numbers<[1], [0], [0], [1], [0, 0, 1, 1], [], []>} : vector<16x16xf32>, vector<16x48xf32>, vector<16x48xf32> -> vector<16x48xf32>
    %3 = vector.extract_strided_slice %2 {offsets = [0, 0], sizes = [16, 16], strides = [1, 1]} : vector<16x48xf32> to vector<16x16xf32>
    %4 = vector.extract_strided_slice %2 {offsets = [0, 16], sizes = [16, 16], strides = [1, 1]} : vector<16x48xf32> to vector<16x16xf32>
    %5 = vector.extract_strided_slice %2 {offsets = [0, 32], sizes = [16, 16], strides = [1, 1]} : vector<16x48xf32> to vector<16x16xf32>
    %c0_3 = arith.constant 0 : index
    %c0_4 = arith.constant 0 : index
    %6 = vector.load %arg1[%c0_3, %c0_4] : memref<16x8xf32, #tpu.memory_space<vmem>>, vector<16x8xf32>
    %cst_5 = arith.constant dense<0.000000e+00> : vector<16xf32>
    %7 = vector.multi_reduction <add>, %6, %cst_5 [1] : vector<16x8xf32> to vector<16xf32>
    %8 = vector.shape_cast %7 : vector<16xf32> to vector<16x1xf32>
    %9 = vector.shape_cast %6 : vector<16x8xf32> to vector<16x1x8xf32>
    %c0_6 = arith.constant 0 : index
    %c0_7 = arith.constant 0 : index
    %c0_8 = arith.constant 0 : index
    %10 = vector.load %arg3[%c0_6, %c0_7, %c0_8] : memref<16x8x8xf32, #tpu.memory_space<vmem>>, vector<16x8x8xf32>
    %11 = vector.broadcast %9 : vector<16x1x8xf32> to vector<16x8x8xf32>
    %12 = arith.mulf %11, %10 : vector<16x8x8xf32>
    %cst_9 = arith.constant dense<0.000000e+00> : vector<16x8xf32>
    %13 = vector.multi_reduction <add>, %12, %cst_9 [2] : vector<16x8x8xf32> to vector<16x8xf32>
    %c0_10 = arith.constant 0 : index
    %c0_11 = arith.constant 0 : index
    %14 = vector.load %arg2[%c0_10, %c0_11] : memref<16x16xf32, #tpu.memory_space<vmem>>, vector<16x16xf32>
    %c0_12 = arith.constant 0 : index
    %c0_13 = arith.constant 0 : index
    %15 = vector.load %arg9[%c0_12, %c0_13] : memref<16x24xf32, #tpu.memory_space<vmem>>, vector<16x16xf32>
    tpu.vector_store %arg9[%c0_12, %c0_13], %14 {strides = array<i32>} : memref<16x24xf32, #tpu.memory_space<vmem>>, vector<16x16xf32>,
    %c0_14 = arith.constant 0 : index
    %c16 = arith.constant 16 : index
    %16 = vector.load %arg9[%c0_14, %c16] : memref<16x24xf32, #tpu.memory_space<vmem>>, vector<16x8xf32>
    tpu.vector_store %arg9[%c0_14, %c16], %13 {strides = array<i32>} : memref<16x24xf32, #tpu.memory_space<vmem>>, vector<16x8xf32>,
    %c0_15 = arith.constant 0 : index
    %c0_16 = arith.constant 0 : index
    %17 = vector.load %arg10[%c0_15, %c0_16] : memref<24x16xf32, #tpu.memory_space<vmem>>, vector<16x16xf32>
    tpu.vector_store %arg10[%c0_15, %c0_16], %4 {strides = array<i32>} : memref<24x16xf32, #tpu.memory_space<vmem>>, vector<16x16xf32>,
    %c0_17 = arith.constant 0 : index
    %c0_18 = arith.constant 0 : index
    %18 = vector.load %arg5[%c0_17, %c0_18] : memref<8x16xf32, #tpu.memory_space<vmem>>, vector<8x16xf32>
    %c16_19 = arith.constant 16 : index
    %c0_20 = arith.constant 0 : index
    %19 = vector.load %arg10[%c16_19, %c0_20] : memref<24x16xf32, #tpu.memory_space<vmem>>, vector<8x16xf32>
    tpu.vector_store %arg10[%c16_19, %c0_20], %18 {strides = array<i32>} : memref<24x16xf32, #tpu.memory_space<vmem>>, vector<8x16xf32>,
    %c0_21 = arith.constant 0 : index
    %c0_22 = arith.constant 0 : index
    %20 = vector.load %arg9[%c0_21, %c0_22] : memref<16x24xf32, #tpu.memory_space<vmem>>, vector<16x24xf32>
    %c0_23 = arith.constant 0 : index
    %c0_24 = arith.constant 0 : index
    %21 = vector.load %arg10[%c0_23, %c0_24] : memref<24x16xf32, #tpu.memory_space<vmem>>, vector<24x16xf32>
    %cst_25 = arith.constant dense<0.000000e+00> : vector<16x16xf32>
    %22 = tpu.matmul %20, %21, %cst_25 {dimension_numbers = #tpu.dot_dimension_numbers<[1], [0], [0], [1], [0, 0, 1, 1], [], []>} : vector<16x24xf32>, vector<24x16xf32>, vector<16x16xf32> -> vector<16x16xf32>
    %c0_26 = arith.constant 0 : index
    %c0_27 = arith.constant 0 : index
    %23 = vector.load %arg7[%c0_26, %c0_27] : memref<1x16xf32, #tpu.memory_space<vmem>>, vector<1x16xf32>
    %24 = vector.broadcast %23 : vector<1x16xf32> to vector<16x16xf32>
    %25 = arith.addf %5, %24 : vector<16x16xf32>
    %c0_28 = arith.constant 0 : index
    %c0_29 = arith.constant 0 : index
    %26 = vector.load %arg6[%c0_28, %c0_29] : memref<1x16xf32, #tpu.memory_space<vmem>>, vector<1x16xf32>
    %27 = vector.broadcast %26 : vector<1x16xf32> to vector<16x16xf32>
    %28 = arith.addf %3, %27 : vector<16x16xf32>
    %29 = vector.broadcast %8 : vector<16x1xf32> to vector<16x16xf32>
    %30 = arith.mulf %29, %28 : vector<16x16xf32>
    %31 = arith.addf %25, %30 : vector<16x16xf32>
    %32 = arith.addf %31, %22 : vector<16x16xf32>
    %c0_30 = arith.constant 0 : index
    %c0_31 = arith.constant 0 : index
    %33 = vector.load %arg8[%c0_30, %c0_31] : memref<16x16xf32, #tpu.memory_space<vmem>>, vector<16x16xf32>
    tpu.vector_store %arg8[%c0_30, %c0_31], %32 {strides = array<i32>} : memref<16x16xf32, #tpu.memory_space<vmem>>, vector<16x16xf32>,
    return
  }
}

</mosaic_0001>

<llo_original>
// kernel: mpnn_conv_pallas.1
$region0: #{mpnn_conv_pallas.1}
  #allocation0 [shape = 'u32[]', space=smem, size = 0x4, offset = 0x4, fixed_abs, tag = 'smem constant byte address 0x4 - core index']
  #allocation1 [shape = 'u32[144,128]{1,0:T(1,128)}', space=vmem, size = 0x12000, scoped, tag = 'internal scratch']
  #allocation2 [shape = 'f32[16,24]{1,0:T(8,128)}', space=vmem, size = 0x2000, scoped, tag = 'scratch operand']
  #allocation3 [shape = 'f32[24,16]{1,0:T(8,128)}', space=vmem, size = 0x3000, scoped, tag = 'scratch operand']
  %s0 = inlined_call_operand.vmem [shape: f32[16,16], index: 0, kind: input, shape index: {}]
  %s1 = inlined_call_operand.vmem [shape: f32[16,8], index: 1, kind: input, shape index: {}]
  %s2 = inlined_call_operand.vmem [shape: f32[16,16], index: 2, kind: input, shape index: {}]
  %s3 = inlined_call_operand.vmem [shape: f32[16,8,8], index: 3, kind: input, shape index: {}]
  %s4 = inlined_call_operand.vmem [shape: f32[16,48], index: 4, kind: input, shape index: {}]
  %s5 = inlined_call_operand.vmem [shape: f32[8,16], index: 5, kind: input, shape index: {}]
  %s6 = inlined_call_operand.vmem [shape: f32[1,16], index: 6, kind: input, shape index: {}]
  %s7 = inlined_call_operand.vmem [shape: f32[1,16], index: 7, kind: input, shape index: {}]
  %s8 = inlined_call_operand.hbm [shape: f32[16,16], index: 8, kind: output, shape index: {}]
  %s9 = sld [smem:[#allocation0]]
  $region42: #{mpnn_conv_pallas.1} parent=0
    _
  %s11 = ssub.s32 1, %s9
  %s12 = scalar_select 0, %s11, %s9
  $region1: #{mpnn_conv_pallas.1} parent=0
    #allocation4 [shape = 'u8[8192]{0}', space=vmem, size = 0x2000, scoped, tag = 'output window, operand 0, single buffered']
    #allocation5 [shape = 's32[1]{0}', space=sflag, size = 0x4, scoped, tag = 'scoped memory for mpnn_conv_pallas.1']
    %13 = vsyncpa [#allocation5], 0
    // Predicated region
    $region2: #{mpnn_conv_pallas.1} parent=1 // pred_check
      _
    $region3: #{mpnn_conv_pallas.1} parent=1 // pred_check_branch
      %15 = sbr.rel (0) target = $region5
    $region4: #{mpnn_conv_pallas.1} parent=1 // pred_region
      _
    $region5: #{mpnn_conv_pallas.1} parent=1 // pred_fallthru
      _
    // Predicated region
    $region6: #{mpnn_conv_pallas.1} parent=1 // pred_check
      _
    $region7: #{mpnn_conv_pallas.1} parent=1 // pred_check_branch
      %17 = sbr.rel (0) target = $region9
    $region8: #{mpnn_conv_pallas.1} parent=1 // pred_region
      _
    $region9: #{mpnn_conv_pallas.1} parent=1 // pred_fallthru
      _
    // Predicated region
    $region10: #{mpnn_conv_pallas.1} parent=1 // pred_check
      _
    $region11: #{mpnn_conv_pallas.1} parent=1 // pred_check_branch
      %19 = sbr.rel (0) target = $region13
    $region12: #{mpnn_conv_pallas.1} parent=1 // pred_region
      _
    $region13: #{mpnn_conv_pallas.1} parent=1 // pred_fallthru
      _
    // Predicated region
    $region14: #{mpnn_conv_pallas.1} parent=1 // pred_check
      _
    $region15: #{mpnn_conv_pallas.1} parent=1 // pred_check_branch
      %21 = sbr.rel (0) target = $region17
    $region16: #{mpnn_conv_pallas.1} parent=1 // pred_region
      _
    $region17: #{mpnn_conv_pallas.1} parent=1 // pred_fallthru
      _
    // Predicated region
    $region18: #{mpnn_conv_pallas.1} parent=1 // pred_check
      _
    $region19: #{mpnn_conv_pallas.1} parent=1 // pred_check_branch
      %23 = sbr.rel (0) target = $region21
    $region20: #{mpnn_conv_pallas.1} parent=1 // pred_region
      _
    $region21: #{mpnn_conv_pallas.1} parent=1 // pred_fallthru
      _
    // Predicated region
    $region22: #{mpnn_conv_pallas.1} parent=1 // pred_check
      _
    $region23: #{mpnn_conv_pallas.1} parent=1 // pred_check_branch
      %25 = sbr.rel (0) target = $region25
    $region24: #{mpnn_conv_pallas.1} parent=1 // pred_region
      _
    $region25: #{mpnn_conv_pallas.1} parent=1 // pred_fallthru
      _
    // Predicated region
    $region26: #{mpnn_conv_pallas.1} parent=1 // pred_check
      _
    $region27: #{mpnn_conv_pallas.1} parent=1 // pred_check_branch
      %27 = sbr.rel (0) target = $region29
    $region28: #{mpnn_conv_pallas.1} parent=1 // pred_region
      _
    $region29: #{mpnn_conv_pallas.1} parent=1 // pred_fallthru
      _
    // Predicated region
    $region30: #{mpnn_conv_pallas.1} parent=1 // pred_check
      _
    $region31: #{mpnn_conv_pallas.1} parent=1 // pred_check_branch
      %29 = sbr.rel (0) target = $region33
    $region32: #{mpnn_conv_pallas.1} parent=1 // pred_region
      _
    $region33: #{mpnn_conv_pallas.1} parent=1 // pred_fallthru
      _
    %v30 = vld [vmem:[%s0] sm:$0xff]
    %v31 = vld [vmem:[%s0 + $0x8] sm:$0xff]
    %v32 = vld [vmem:[%s4] sm:$0xff]
    %v33 = vld [vmem:[%s4 + $0x8] sm:$0xff]
    %vm34 = vcmask 130048
    %v36 = vsel %vm34, %v30, 0
    %v39 = vsel %vm34, %v31, 0
    %41 = vmatprep.subr.mxu0 0.0
    %42 = vmatpush1.msra.mxu0 0.0
    %43 = vmatprep.subr.mxu0 0.0
    %44 = vmatpush1.msra.mxu0 0.0
    %45 = vmatprep.subr.mxu0 0.0
    %46 = vmatpush1.msra.mxu0 0.0
    %47 = vmatprep.subr.mxu0 0.0
    %48 = vmatpush1.msra.mxu0 0.0
    %49 = vmatprep.subr.mxu0 0.0
    %50 = vmatpush1.msra.mxu0 0.0
    %51 = vmatprep.subr.mxu0 0.0
    %52 = vmatpush1.msra.mxu0 0.0
    %53 = vmatprep.subr.mxu0 0.0
    %54 = vmatpush1.msra.mxu0 0.0
    %55 = vmatprep.subr.mxu0 0.0
    %56 = vmatpush1.msra.mxu0 0.0
    %57 = vmatprep.subr.mxu0 0.0
    %58 = vmatpush1.msra.mxu0 0.0
    %59 = vmatprep.subr.mxu0 0.0
    %60 = vmatpush1.msra.mxu0 0.0
    %61 = vmatprep.subr.mxu0 0.0
    %62 = vmatpush1.msra.mxu0 0.0
    %63 = vmatprep.subr.mxu0 0.0
    %64 = vmatpush1.msra.mxu0 0.0
    %65 = vmatprep.subr.mxu0 0.0
    %66 = vmatpush1.msra.mxu0 0.0
    %67 = vmatprep.subr.mxu0 0.0
    %68 = vmatpush1.msra.mxu0 0.0
    %69 = vmatprep.subr.mxu0 0.0
    %70 = vmatpush1.msra.mxu0 %v33
    %71 = vmatprep.subr.mxu0 0.0
    %72 = vmatpush1.msra.mxu0 %v32
    %73 = vmatprep.subr.mxu0 0.0
    %74 = vmatpush2.msra.mxu0 0.0
    %75 = vmatprep.subr.mxu0 0.0
    %76 = vmatpush2.msra.mxu0 0.0
    %77 = vmatprep.subr.mxu0 0.0
    %78 = vmatpush2.msra.mxu0 0.0
    %79 = vmatprep.subr.mxu0 0.0
    %80 = vmatpush2.msra.mxu0 0.0
    %81 = vmatprep.subr.mxu0 0.0
    %82 = vmatpush2.msra.mxu0 0.0
    %83 = vmatprep.subr.mxu0 0.0
    %84 = vmatpush2.msra.mxu0 0.0
    %85 = vmatprep.subr.mxu0 0.0
    %86 = vmatpush2.msra.mxu0 0.0
    %87 = vmatprep.subr.mxu0 0.0
    %88 = vmatpush2.msra.mxu0 0.0
    %89 = vmatprep.subr.mxu0 0.0
    %90 = vmatpush2.msra.mxu0 0.0
    %91 = vmatprep.subr.mxu0 0.0
    %92 = vmatpush2.msra.mxu0 0.0
    %93 = vmatprep.subr.mxu0 0.0
    %94 = vmatpush2.msra.mxu0 0.0
    %95 = vmatprep.subr.mxu0 0.0
    %96 = vmatpush2.msra.mxu0 0.0
    %97 = vmatprep.subr.mxu0 0.0
    %98 = vmatpush2.msra.mxu0 0.0
    %99 = vmatprep.subr.mxu0 0.0
    %100 = vmatpush2.msra.mxu0 0.0
    %101 = vmatprep.subr.mxu0 0.0
    %102 = vmatpush2.msra.mxu0 0.0
    %103 = vmatprep.subr.mxu0 0.0
    %104 = vmatpush2.msra.mxu0 0.0
    %105 = vmatprep.mubr.f32.mxu0 0.0
    %106 = vmatmul.mubr.f32.gmra.mxu0 %v36
    %v107 = vpop.f32.mrf.mxu0
    %v108 = vadd.f32 0.0, %v107
    %v109 = vpop.f32.mrf.mxu0
    %110 = vmatprep.mubr.f32.mxu0 0.0
    %111 = vmatmul.mubr.f32.gmra.mxu0 %v39
    %v112 = vpop.f32.mrf.mxu0
    %v113 = vadd.f32 0.0, %v112
    %v114 = vpop.f32.mrf.mxu0
    %115 = vdwg.mxu0
    %v116 = vld [vmem:[%s1] sm:$0xff]
    %v117 = vld [vmem:[%s1 + $0x8] sm:$0xff]
    %vm118 = vcmask 64512
    %v119 = vsel %vm118, %v116, 0.0
    %120 = vadd.xlane.f32.xlu0 %v119
    %v121 = vpop.xlane.xlu0 %120
    %v122 = vsel %vm118, %v117, 0.0
    %123 = vadd.xlane.f32.xlu0 %v122
    %v124 = vpop.xlane.xlu0 %123
    %v127 = vcombine.high %v116, %v116
    %v129 = vunpack.c.l.s4 1966171168
    %v130 = vunpack.c.0.s8 %v129
    %v131 = vlaneseq
    %v132 = vshrl.u32 %v131, 7
    %v133 = vsub.s32 %v130, %v132
    %v134 = vrot.slane %v116, %v133
    %v136 = vunpack.c.l.s4 1966171168
    %v137 = vunpack.c.0.s8 %v136
    %v138 = vlaneseq
    %v139 = vshrl.u32 %v138, 7
    %v140 = vsub.s32 %v137, %v139
    %v141 = vrot.slane %v127, %v140
    %v142 = vcombine.high %v134, %v134
    %v143 = vcombine.high %v141, %v141
    %v145 = vunpack.c.l.s4 1966171168
    %v146 = vunpack.c.0.s8 %v145
    %v147 = vlaneseq
    %v148 = vshrl.u32 %v147, 7
    %v149 = vsub.s32 %v146, %v148
    %v150 = vrot.slane %v134, %v149
    %v152 = vunpack.c.l.s4 1966171168
    %v153 = vunpack.c.0.s8 %v152
    %v154 = vlaneseq
    %v155 = vshrl.u32 %v154, 7
    %v156 = vsub.s32 %v153, %v155
    %v157 = vrot.slane %v141, %v156
    %v159 = vunpack.c.l.s4 1966171168
    %v160 = vunpack.c.0.s8 %v159
    %v161 = vlaneseq
    %v162 = vshrl.u32 %v161, 7
    %v163 = vsub.s32 %v160, %v162
    %v164 = vrot.slane %v142, %v163
    %v166 = vunpack.c.l.s4 1966171168
    %v167 = vunpack.c.0.s8 %v166
    %v168 = vlaneseq
    %v169 = vshrl.u32 %v168, 7
    %v170 = vsub.s32 %v167, %v169
    %v171 = vrot.slane %v143, %v170
    %v172 = vcombine.high %v150, %v150
    %v173 = vcombine.high %v157, %v157
    %v174 = vcombine.high %v164, %v164
    %v175 = vcombine.high %v171, %v171
    %v176 = vcombine.high %v117, %v117
    %v178 = vunpack.c.l.s4 1966171168
    %v179 = vunpack.c.0.s8 %v178
    %v180 = vlaneseq
    %v181 = vshrl.u32 %v180, 7
    %v182 = vsub.s32 %v179, %v181
    %v183 = vrot.slane %v117, %v182
    %v185 = vunpack.c.l.s4 1966171168
    %v186 = vunpack.c.0.s8 %v185
    %v187 = vlaneseq
    %v188 = vshrl.u32 %v187, 7
    %v189 = vsub.s32 %v186, %v188
    %v190 = vrot.slane %v176, %v189
    %v191 = vcombine.high %v183, %v183
    %v192 = vcombine.high %v190, %v190
    %v194 = vunpack.c.l.s4 1966171168
    %v195 = vunpack.c.0.s8 %v194
    %v196 = vlaneseq
    %v197 = vshrl.u32 %v196, 7
    %v198 = vsub.s32 %v195, %v197
    %v199 = vrot.slane %v183, %v198
    %v201 = vunpack.c.l.s4 1966171168
    %v202 = vunpack.c.0.s8 %v201
    %v203 = vlaneseq
    %v204 = vshrl.u32 %v203, 7
    %v205 = vsub.s32 %v202, %v204
    %v206 = vrot.slane %v190, %v205
    %v208 = vunpack.c.l.s4 1966171168
    %v209 = vunpack.c.0.s8 %v208
    %v210 = vlaneseq
    %v211 = vshrl.u32 %v210, 7
    %v212 = vsub.s32 %v209, %v211
    %v213 = vrot.slane %v191, %v212
    %v215 = vunpack.c.l.s4 1966171168
    %v216 = vunpack.c.0.s8 %v215
    %v217 = vlaneseq
    %v218 = vshrl.u32 %v217, 7
    %v219 = vsub.s32 %v216, %v218
    %v220 = vrot.slane %v192, %v219
    %v221 = vcombine.high %v199, %v199
    %v222 = vcombine.high %v206, %v206
    %v223 = vcombine.high %v213, %v213
    %v224 = vcombine.high %v220, %v220
    %v225 = vld [vmem:[%s3] sm:$0xff]
    %v226 = vld [vmem:[%s3 + $0x8] sm:$0xff]
    %v227 = vld [vmem:[%s3 + $0x10] sm:$0xff]
    %v228 = vld [vmem:[%s3 + $0x18] sm:$0xff]
    %v229 = vld [vmem:[%s3 + $0x20] sm:$0xff]
    %v230 = vld [vmem:[%s3 + $0x28] sm:$0xff]
    %v231 = vld [vmem:[%s3 + $0x30] sm:$0xff]
    %v232 = vld [vmem:[%s3 + $0x38] sm:$0xff]
    %v233 = vld [vmem:[%s3 + $0x40] sm:$0xff]
    %v234 = vld [vmem:[%s3 + $0x48] sm:$0xff]
    %v235 = vld [vmem:[%s3 + $0x50] sm:$0xff]
    %v236 = vld [vmem:[%s3 + $0x58] sm:$0xff]
    %v237 = vld [vmem:[%s3 + $0x60] sm:$0xff]
    %v238 = vld [vmem:[%s3 + $0x68] sm:$0xff]
    %v239 = vld [vmem:[%s3 + $0x70] sm:$0xff]
    %v240 = vld [vmem:[%s3 + $0x78] sm:$0xff]
    %v241 = vlaneseq
    %v242 = vshrl.u32 %v241, 7
    %v243 = vsub.s32 0, %v242
    %v244 = vrot.slane %v150, %v243
    %v245 = vlaneseq
    %v246 = vshrl.u32 %v245, 7
    %v247 = vsub.s32 0, %v246
    %v248 = vrot.slane %v164, %v247
    %v249 = vlaneseq
    %v250 = vshrl.u32 %v249, 7
    %v251 = vsub.s32 0, %v250
    %v252 = vrot.slane %v172, %v251
    %v253 = vlaneseq
    %v254 = vshrl.u32 %v253, 7
    %v255 = vsub.s32 0, %v254
    %v256 = vrot.slane %v174, %v255
    %v257 = vlaneseq
    %v258 = vshrl.u32 %v257, 7
    %v259 = vsub.s32 0, %v258
    %v260 = vrot.slane %v157, %v259
    %v261 = vlaneseq
    %v262 = vshrl.u32 %v261, 7
    %v263 = vsub.s32 0, %v262
    %v264 = vrot.slane %v171, %v263
    %v265 = vlaneseq
    %v266 = vshrl.u32 %v265, 7
    %v267 = vsub.s32 0, %v266
    %v268 = vrot.slane %v173, %v267
    %v269 = vlaneseq
    %v270 = vshrl.u32 %v269, 7
    %v271 = vsub.s32 0, %v270
    %v272 = vrot.slane %v175, %v271
    %v273 = vlaneseq
    %v274 = vshrl.u32 %v273, 7
    %v275 = vsub.s32 0, %v274
    %v276 = vrot.slane %v199, %v275
    %v277 = vlaneseq
    %v278 = vshrl.u32 %v277, 7
    %v279 = vsub.s32 0, %v278
    %v280 = vrot.slane %v213, %v279
    %v281 = vlaneseq
    %v282 = vshrl.u32 %v281, 7
    %v283 = vsub.s32 0, %v282
    %v284 = vrot.slane %v221, %v283
    %v285 = vlaneseq
    %v286 = vshrl.u32 %v285, 7
    %v287 = vsub.s32 0, %v286
    %v288 = vrot.slane %v223, %v287
    %v289 = vlaneseq
    %v290 = vshrl.u32 %v289, 7
    %v291 = vsub.s32 0, %v290
    %v292 = vrot.slane %v206, %v291
    %v293 = vlaneseq
    %v294 = vshrl.u32 %v293, 7
    %v295 = vsub.s32 0, %v294
    %v296 = vrot.slane %v220, %v295
    %v297 = vlaneseq
    %v298 = vshrl.u32 %v297, 7
    %v299 = vsub.s32 0, %v298
    %v300 = vrot.slane %v222, %v299
    %v301 = vlaneseq
    %v302 = vshrl.u32 %v301, 7
    %v303 = vsub.s32 0, %v302
    %v304 = vrot.slane %v224, %v303
    %v321 = vmul.f32 %v244, %v225
    %v322 = vmul.f32 %v248, %v226
    %v323 = vmul.f32 %v252, %v227
    %v324 = vmul.f32 %v256, %v228
    %v325 = vmul.f32 %v260, %v229
    %v326 = vmul.f32 %v264, %v230
    %v327 = vmul.f32 %v268, %v231
    %v328 = vmul.f32 %v272, %v232
    %v329 = vmul.f32 %v276, %v233
    %v330 = vmul.f32 %v280, %v234
    %v331 = vmul.f32 %v284, %v235
    %v332 = vmul.f32 %v288, %v236
    %v333 = vmul.f32 %v292, %v237
    %v334 = vmul.f32 %v296, %v238
    %v335 = vmul.f32 %v300, %v239
    %v336 = vmul.f32 %v304, %v240
    %v337 = vsel %vm118, %v321, 0.0
    %338 = vadd.xlane.f32.xlu0 %v337
    %v339 = vpop.xlane.xlu0 %338
    %v340 = vsel %vm118, %v322, 0.0
    %341 = vadd.xlane.f32.xlu0 %v340
    %v342 = vpop.xlane.xlu0 %341
    %v343 = vsel %vm118, %v323, 0.0
    %344 = vadd.xlane.f32.xlu0 %v343
    %v345 = vpop.xlane.xlu0 %344
    %v346 = vsel %vm118, %v324, 0.0
    %347 = vadd.xlane.f32.xlu0 %v346
    %v348 = vpop.xlane.xlu0 %347
    %v349 = vsel %vm118, %v325, 0.0
    %350 = vadd.xlane.f32.xlu0 %v349
    %v351 = vpop.xlane.xlu0 %350
    %v352 = vsel %vm118, %v326, 0.0
    %353 = vadd.xlane.f32.xlu0 %v352
    %v354 = vpop.xlane.xlu0 %353
    %v355 = vsel %vm118, %v327, 0.0
    %356 = vadd.xlane.f32.xlu0 %v355
    %v357 = vpop.xlane.xlu0 %356
    %v358 = vsel %vm118, %v328, 0.0
    %359 = vadd.xlane.f32.xlu0 %v358
    %v360 = vpop.xlane.xlu0 %359
    %v361 = vsel %vm118, %v329, 0.0
    %362 = vadd.xlane.f32.xlu0 %v361
    %v363 = vpop.xlane.xlu0 %362
    %v364 = vsel %vm118, %v330, 0.0
    %365 = vadd.xlane.f32.xlu0 %v364
    %v366 = vpop.xlane.xlu0 %365
    %v367 = vsel %vm118, %v331, 0.0
    %368 = vadd.xlane.f32.xlu0 %v367
    %v369 = vpop.xlane.xlu0 %368
    %v370 = vsel %vm118, %v332, 0.0
    %371 = vadd.xlane.f32.xlu0 %v370
    %v372 = vpop.xlane.xlu0 %371
    %v373 = vsel %vm118, %v333, 0.0
    %374 = vadd.xlane.f32.xlu0 %v373
    %v375 = vpop.xlane.xlu0 %374
    %v376 = vsel %vm118, %v334, 0.0
    %377 = vadd.xlane.f32.xlu0 %v376
    %v378 = vpop.xlane.xlu0 %377
    %v379 = vsel %vm118, %v335, 0.0
    %380 = vadd.xlane.f32.xlu0 %v379
    %v381 = vpop.xlane.xlu0 %380
    %v382 = vsel %vm118, %v336, 0.0
    %383 = vadd.xlane.f32.xlu0 %v382
    %v384 = vpop.xlane.xlu0 %383
    %v385 = vld [vmem:[%s2] sm:$0xff]
    %v386 = vld [vmem:[%s2 + $0x8] sm:$0xff]
    %387 = vst.msk [vmem:[#allocation2] sm:$0xff] %vm34, %v385
    %388 = vst.msk [vmem:[#allocation2 + $0x8] sm:$0xff] %vm34, %v386
    %v405 = vlaneseq
    %v406 = vand.u32 %v405, 127
    %v407 = vadd.s32 %v406, 4294967280
    %v408 = vlaneseq
    %v409 = vshrl.u32 %v408, 7
    %v410 = vsub.s32 %v407, %v409
    %v411 = vrot.slane %v339, %v410
    %v412 = vlaneseq
    %v413 = vshrl.u32 %v412, 7
    %v414 = vsub.s32 %v407, %v413
    %v415 = vrot.slane %v342, %v414
    %v416 = vlaneseq
    %v417 = vshrl.u32 %v416, 7
    %v418 = vsub.s32 %v407, %v417
    %v419 = vrot.slane %v345, %v418
    %v420 = vlaneseq
    %v421 = vshrl.u32 %v420, 7
    %v422 = vsub.s32 %v407, %v421
    %v423 = vrot.slane %v348, %v422
    %v424 = vlaneseq
    %v425 = vshrl.u32 %v424, 7
    %v426 = vsub.s32 %v407, %v425
    %v427 = vrot.slane %v351, %v426
    %v428 = vlaneseq
    %v429 = vshrl.u32 %v428, 7
    %v430 = vsub.s32 %v407, %v429
    %v431 = vrot.slane %v354, %v430
    %v432 = vlaneseq
    %v433 = vshrl.u32 %v432, 7
    %v434 = vsub.s32 %v407, %v433
    %v435 = vrot.slane %v357, %v434
    %v436 = vlaneseq
    %v437 = vshrl.u32 %v436, 7
    %v438 = vsub.s32 %v407, %v437
    %v439 = vrot.slane %v360, %v438
    %v440 = vlaneseq
    %v441 = vshrl.u32 %v440, 7
    %v442 = vsub.s32 %v407, %v441
    %v443 = vrot.slane %v363, %v442
    %v444 = vlaneseq
    %v445 = vshrl.u32 %v444, 7
    %v446 = vsub.s32 %v407, %v445
    %v447 = vrot.slane %v366, %v446
    %v448 = vlaneseq
    %v449 = vshrl.u32 %v448, 7
    %v450 = vsub.s32 %v407, %v449
    %v451 = vrot.slane %v369, %v450
    %v452 = vlaneseq
    %v453 = vshrl.u32 %v452, 7
    %v454 = vsub.s32 %v407, %v453
    %v455 = vrot.slane %v372, %v454
    %v456 = vlaneseq
    %v457 = vshrl.u32 %v456, 7
    %v458 = vsub.s32 %v407, %v457
    %v459 = vrot.slane %v375, %v458
    %v460 = vlaneseq
    %v461 = vshrl.u32 %v460, 7
    %v462 = vsub.s32 %v407, %v461
    %v463 = vrot.slane %v378, %v462
    %v464 = vlaneseq
    %v465 = vshrl.u32 %v464, 7
    %v466 = vsub.s32 %v407, %v465
    %v467 = vrot.slane %v381, %v466
    %v468 = vlaneseq
    %v469 = vshrl.u32 %v468, 7
    %v470 = vsub.s32 %v407, %v469
    %v471 = vrot.slane %v384, %v470
    %vm472 = vcmask 1041409
    %v473 = vsel %vm472, %v415, %v411
    %vm474 = vcmask 1042434
    %v475 = vsel %vm474, %v419, %v473
    %vm476 = vcmask 1043459
    %v477 = vsel %vm476, %v423, %v475
    %vm478 = vcmask 1044484
    %v479 = vsel %vm478, %v427, %v477
    %vm480 = vcmask 1045509
    %v481 = vsel %vm480, %v431, %v479
    %vm482 = vcmask 1046534
    %v483 = vsel %vm482, %v435, %v481
    %vm484 = vcmask 1047559
    %v485 = vsel %vm484, %v439, %v483
    %v486 = vsel %vm472, %v447, %v443
    %v487 = vsel %vm474, %v451, %v486
    %v488 = vsel %vm476, %v455, %v487
    %v489 = vsel %vm478, %v459, %v488
    %v490 = vsel %vm480, %v463, %v489
    %v491 = vsel %vm482, %v467, %v490
    %v492 = vsel %vm484, %v471, %v491
    %vm495 = vcmask 195712
    %496 = vst.msk [vmem:[#allocation2] sm:$0xff] %vm495, %v485
    %497 = vst.msk [vmem:[#allocation2 + $0x8] sm:$0xff] %vm495, %v492
    %500 = vrot.lane.b32.xlu0 %v108, 112
    %v501 = vpop.permute.xlu0 %500
    %502 = vrot.lane.b32.xlu0 %v113, 112
    %v503 = vpop.permute.xlu0 %502
    %506 = vst.msk [vmem:[#allocation3] sm:$0xff] %vm34, %v501
    %507 = vst.msk [vmem:[#allocation3 + $0x8] sm:$0xff] %vm34, %v503
    %v508 = vld [vmem:[%s5] sm:$0xff]
    %509 = vst.msk [vmem:[#allocation3 + $0x10] sm:$0xff] %vm34, %v508
    %v510 = vld [vmem:[#allocation2] sm:$0xff]
    %v511 = vld [vmem:[#allocation2 + $0x8] sm:$0xff]
    %v512 = vld [vmem:[#allocation3] sm:$0xff]
    %v513 = vld [vmem:[#allocation3 + $0x8] sm:$0xff]
    %v514 = vld [vmem:[#allocation3 + $0x10] sm:$0xff]
    %vm515 = vcmask 195584
    %v517 = vsel %vm515, %v510, 0
    %v520 = vsel %vm515, %v511, 0
    %522 = vmatprep.subr.mxu0 0.0
    %523 = vmatpush1.msra.mxu0 0.0
    %524 = vmatprep.subr.mxu0 0.0
    %525 = vmatpush1.msra.mxu0 0.0
    %526 = vmatprep.subr.mxu0 0.0
    %527 = vmatpush1.msra.mxu0 0.0
    %528 = vmatprep.subr.mxu0 0.0
    %529 = vmatpush1.msra.mxu0 0.0
    %530 = vmatprep.subr.mxu0 0.0
    %531 = vmatpush1.msra.mxu0 0.0
    %532 = vmatprep.subr.mxu0 0.0
    %533 = vmatpush1.msra.mxu0 0.0
    %534 = vmatprep.subr.mxu0 0.0
    %535 = vmatpush1.msra.mxu0 0.0
    %536 = vmatprep.subr.mxu0 0.0
    %537 = vmatpush1.msra.mxu0 0.0
    %538 = vmatprep.subr.mxu0 0.0
    %539 = vmatpush1.msra.mxu0 0.0
    %540 = vmatprep.subr.mxu0 0.0
    %541 = vmatpush1.msra.mxu0 0.0
    %542 = vmatprep.subr.mxu0 0.0
    %543 = vmatpush1.msra.mxu0 0.0
    %544 = vmatprep.subr.mxu0 0.0
    %545 = vmatpush1.msra.mxu0 0.0
    %546 = vmatprep.subr.mxu0 0.0
    %547 = vmatpush1.msra.mxu0 0.0
    %548 = vmatprep.subr.mxu0 0.0
    %549 = vmatpush1.msra.mxu0 %v514
    %550 = vmatprep.subr.mxu0 0.0
    %551 = vmatpush1.msra.mxu0 %v513
    %552 = vmatprep.subr.mxu0 0.0
    %553 = vmatpush1.msra.mxu0 %v512
    %554 = vmatprep.subr.mxu0 0.0
    %555 = vmatpush2.msra.mxu0 0.0
    %556 = vmatprep.subr.mxu0 0.0
    %557 = vmatpush2.msra.mxu0 0.0
    %558 = vmatprep.subr.mxu0 0.0
    %559 = vmatpush2.msra.mxu0 0.0
    %560 = vmatprep.subr.mxu0 0.0
    %561 = vmatpush2.msra.mxu0 0.0
    %562 = vmatprep.subr.mxu0 0.0
    %563 = vmatpush2.msra.mxu0 0.0
    %564 = vmatprep.subr.mxu0 0.0
    %565 = vmatpush2.msra.mxu0 0.0
    %566 = vmatprep.subr.mxu0 0.0
    %567 = vmatpush2.msra.mxu0 0.0
    %568 = vmatprep.subr.mxu0 0.0
    %569 = vmatpush2.msra.mxu0 0.0
    %570 = vmatprep.subr.mxu0 0.0
    %571 = vmatpush2.msra.mxu0 0.0
    %572 = vmatprep.subr.mxu0 0.0
    %573 = vmatpush2.msra.mxu0 0.0
    %574 = vmatprep.subr.mxu0 0.0
    %575 = vmatpush2.msra.mxu0 0.0
    %576 = vmatprep.subr.mxu0 0.0
    %577 = vmatpush2.msra.mxu0 0.0
    %578 = vmatprep.subr.mxu0 0.0
    %579 = vmatpush2.msra.mxu0 0.0
    %580 = vmatprep.subr.mxu0 0.0
    %581 = vmatpush2.msra.mxu0 0.0
    %582 = vmatprep.subr.mxu0 0.0
    %583 = vmatpush2.msra.mxu0 0.0
    %584 = vmatprep.subr.mxu0 0.0
    %585 = vmatpush2.msra.mxu0 0.0
    %586 = vmatprep.mubr.f32.mxu0 0.0
    %587 = vmatmul.mubr.f32.gmra.mxu0 %v517
    %v588 = vpop.f32.mrf.mxu0
    %v589 = vadd.f32 0.0, %v588
    %v590 = vpop.f32.mrf.mxu0
    %591 = vmatprep.mubr.f32.mxu0 0.0
    %592 = vmatmul.mubr.f32.gmra.mxu0 %v520
    %v593 = vpop.f32.mrf.mxu0
    %v594 = vadd.f32 0.0, %v593
    %v595 = vpop.f32.mrf.mxu0
    %596 = vdwg.mxu0
    %v597 = vld [vmem:[%s7] sm:$0x1]
    %v599 = vlaneseq
    %v600 = vshrl.u32 %v599, 7
    %v601 = vsub.s32 0, %v600
    %v602 = vrot.slane %v597, %v601
    %603 = vrot.lane.b32.xlu0 %v602, 32
    %v604 = vpop.permute.xlu0 %603
    %v606 = vadd.f32 %v108, %v604
    %v607 = vadd.f32 %v113, %v604
    %v608 = vld [vmem:[%s6] sm:$0x1]
    %v610 = vlaneseq
    %v611 = vshrl.u32 %v610, 7
    %v612 = vsub.s32 0, %v611
    %v613 = vrot.slane %v608, %v612
    %v615 = vadd.f32 %v108, %v613
    %v616 = vadd.f32 %v113, %v613
    %v617 = vmul.f32 %v121, %v615
    %v618 = vmul.f32 %v124, %v616
    %621 = vrot.lane.b32.xlu0 %v617, 32
    %v622 = vpop.permute.xlu0 %621
    %623 = vrot.lane.b32.xlu0 %v618, 32
    %v624 = vpop.permute.xlu0 %623
    %v627 = vadd.f32 %v606, %v622
    %v628 = vadd.f32 %v607, %v624
    %631 = vrot.lane.b32.xlu0 %v589, 32
    %v632 = vpop.permute.xlu0 %631
    %633 = vrot.lane.b32.xlu0 %v594, 32
    %v634 = vpop.permute.xlu0 %633
    %v637 = vadd.f32 %v627, %v632
    %v638 = vadd.f32 %v628, %v634
    %641 = vrot.lane.b32.xlu0 %v637, 96
    %v642 = vpop.permute.xlu0 %641
    %643 = vrot.lane.b32.xlu0 %v638, 96
    %v644 = vpop.permute.xlu0 %643
    %647 = vst.msk [vmem:[#allocation4] sm:$0xff] %vm34, %v642
    %648 = vst.msk [vmem:[#allocation4 + $0x8] sm:$0xff] %vm34, %v644
    // Predicated region
    $region34: #{mpnn_conv_pallas.1} parent=1 // pred_check
      _
    $region35: #{mpnn_conv_pallas.1} parent=1 // pred_check_branch
      %650 = sbr.rel (0) target = $region37
    $region36: #{mpnn_conv_pallas.1} parent=1 // pred_region
      %s652 = ssub.s32 256, 256
      %653 = vsyncadd [#allocation5], %s652
      %s654 = sshll.u32 [#allocation4], 4
      %s655 = int_to_ptr.vmem [resolvable:$true] %s654
      %660 = dma.vmem_to_hbm [thread:$0]  %s655, 256, %s8, [#allocation5], 128, 128, 8
    $region37: #{mpnn_conv_pallas.1} parent=1 // pred_fallthru
      _
    // Predicated region
    $region38: #{mpnn_conv_pallas.1} parent=1 // pred_check
      _
    $region39: #{mpnn_conv_pallas.1} parent=1 // pred_check_branch
      %662 = sbr.rel (0) target = $region41
    $region40: #{mpnn_conv_pallas.1} parent=1 // pred_region
      %663 = dma.done [#allocation5], 256
    $region41: #{mpnn_conv_pallas.1} parent=1 // pred_fallthru
      _
    %664 = vsyncpa [#allocation5], 1

</llo_original>
